<compile_context>
chip_gen: v7x
topology: tpu7x:2x2x1
jax: 0.10.0
libtpu: 0.0.40
codegen_flags: <defaults>
</compile_context>

<pallas_src>
import functools

import jax
import jax.numpy as jnp
from jax import lax
from jax.experimental import pallas as pl
from jax.experimental.pallas import tpu as pltpu


# --------------------------------------------------------------------------- #
# Pallas kernel: fused  W@X (+ W2@X2) + shift  [+ residual] [-> ReLU]
# --------------------------------------------------------------------------- #
def _matmul_bn_kernel(*refs, apply_relu, has_residual, has_second, single_k):
    # Ref layout (in-order):
    #   x_ref  : (Ci , TM)   activations (Ci on sublanes, spatial on lanes), bf16
    #   w_ref  : (TCo, Ci)   BN-scale-folded weights, bf16
    #  [x2_ref : (Ci2, TM)   second activation stream (fused downsample), bf16]
    #  [w2_ref : (TCo, Ci2)  second weight stream, bf16]
    #   shift  : (TCo, 1)    folded BN shift (f32)
    #  [res    : (TCo, TM)   residual / identity, bf16]
    #   o_ref  : (TCo, TM)   output
    #  [acc    : (TCo, TM)   f32 VMEM accumulator (only when K-tiled)]
    it = iter(refs)
    x_ref = next(it)
    w_ref = next(it)
    if has_second:
        x2_ref = next(it)
        w2_ref = next(it)
    shift_ref = next(it)
    res_ref = next(it) if has_residual else None
    o_ref = next(it)
    acc_ref = None if single_k else next(it)

    def epilogue(acc):
        y = acc + shift_ref[...]
        if has_residual:
            y = y + res_ref[...].astype(jnp.float32)
        if apply_relu:
            y = jnp.maximum(y, 0.0)
        o_ref[...] = y.astype(o_ref.dtype)

    if single_k:
        acc = jnp.dot(w_ref[...], x_ref[...], preferred_element_type=jnp.float32)
        if has_second:
            acc = acc + jnp.dot(w2_ref[...], x2_ref[...],
                                preferred_element_type=jnp.float32)
        epilogue(acc)
    else:
        k = pl.program_id(3)

        @pl.when(k == 0)
        def _():
            acc_ref[...] = jnp.zeros_like(acc_ref)

        acc_ref[...] += jnp.dot(w_ref[...], x_ref[...],
                                preferred_element_type=jnp.float32)

        @pl.when(k == pl.num_programs(3) - 1)
        def _():
            epilogue(acc_ref[...])


def _round_up(x, m):
    return ((x + m - 1) // m) * m


def _pick_tile(dim, pref, req):
    """Largest tile <= pref that is a multiple of `req` and divides `dim`;
    falls back to the full dim (always BlockSpec-legal)."""
    if dim <= pref:
        return dim
    if dim % req != 0:
        return dim
    t = (pref // req) * req
    while t >= req:
        if dim % t == 0:
            return t
        t -= req
    return dim


def _conv_bn_act(x, w, shift, *, relu, out_dtype, x2=None, w2=None, residual=None,
                 pref_m=1024, pref_co=256, pref_ci=256, ci_single_max=1024):
    """y[n, co, m] = relu?( w@x (+ w2@x2) + shift (+ residual) ).

    x: (N, Ci, M) bf16, w: (Co, Ci) bf16, shift: (Co, 1) f32,
    x2: (N, Ci2, M) bf16, w2: (Co, Ci2) bf16, residual: (N, Co, M).
    Returns (N, Co, M) in out_dtype.
    """
    N, Ci, M = x.shape
    Co = w.shape[0]

    # Lane-dense padding of the spatial axis -> unmasked 128-lane stores.
    Mp = _round_up(M, 128)

    def pad_m(a):
        if a is None or a.shape[-1] == Mp:
            return a
        return jnp.pad(a, ((0, 0), (0, 0), (0, Mp - a.shape[-1])))

    xp, x2p, resp = pad_m(x), pad_m(x2), pad_m(residual)

    TM = _pick_tile(Mp, pref_m, 128)
    TCo = _pick_tile(Co, pref_co, 8)

    has_second = x2 is not None
    has_residual = residual is not None

    # Keep the full contraction resident (no K grid axis) whenever it fits;
    # only very large, 128-aligned Ci falls back to a K-tiled accumulator.
    single_k = has_second or (Ci <= ci_single_max) or (Ci % 128 != 0)
    if not single_k:
        TCi = _pick_tile(Ci, pref_ci, 128)
        kt = Ci // TCi
        single_k = (kt == 1)

    flops = 2 * N * Co * Ci * Mp
    bytes_accessed = (xp.size * xp.dtype.itemsize + w.size * w.dtype.itemsize
                      + shift.size * 4 + N * Co * Mp * jnp.dtype(out_dtype).itemsize)
    if has_second:
        flops += 2 * N * Co * x2p.shape[1] * Mp
        bytes_accessed += x2p.size * x2p.dtype.itemsize + w2.size * w2.dtype.itemsize
    if has_residual:
        bytes_accessed += resp.size * resp.dtype.itemsize

    kernel = functools.partial(_matmul_bn_kernel, apply_relu=relu,
                               has_residual=has_residual, has_second=has_second,
                               single_k=single_k)

    args = [xp, w]
    if single_k:
        grid = (Co // TCo, Mp // TM, N)
        in_specs = [
            pl.BlockSpec((None, Ci, TM), lambda i, j, n: (n, 0, j)),
            pl.BlockSpec((TCo, Ci), lambda i, j, n: (i, 0)),
        ]
        if has_second:
            Ci2 = x2p.shape[1]
            in_specs += [
                pl.BlockSpec((None, Ci2, TM), lambda i, j, n: (n, 0, j)),
                pl.BlockSpec((TCo, Ci2), lambda i, j, n: (i, 0)),
            ]
            args += [x2p, w2]
        in_specs.append(pl.BlockSpec((TCo, 1), lambda i, j, n: (i, 0)))
        args.append(shift)
        if has_residual:
            in_specs.append(pl.BlockSpec((None, TCo, TM), lambda i, j, n: (n, i, j)))
            args.append(resp)
        out_spec = pl.BlockSpec((None, TCo, TM), lambda i, j, n: (n, i, j))
        scratch = []
        sem = ("parallel", "parallel", "parallel")
    else:
        grid = (Co // TCo, Mp // TM, N, kt)
        in_specs = [
            pl.BlockSpec((None, TCi, TM), lambda i, j, n, k: (n, k, j)),
            pl.BlockSpec((TCo, TCi), lambda i, j, n, k: (i, k)),
            pl.BlockSpec((TCo, 1), lambda i, j, n, k: (i, 0)),
        ]
        args.append(shift)
        if has_residual:
            in_specs.append(pl.BlockSpec((None, TCo, TM),
                                         lambda i, j, n, k: (n, i, j)))
            args.append(resp)
        out_spec = pl.BlockSpec((None, TCo, TM), lambda i, j, n, k: (n, i, j))
        scratch = [pltpu.VMEM((TCo, TM), jnp.float32)]
        sem = ("parallel", "parallel", "parallel", "arbitrary")

    out = pl.pallas_call(
        kernel,
        out_shape=jax.ShapeDtypeStruct((N, Co, Mp), out_dtype),
        grid_spec=pltpu.PrefetchScalarGridSpec(
            num_scalar_prefetch=0,
            grid=grid,
            in_specs=in_specs,
            out_specs=out_spec,
            scratch_shapes=scratch,
        ),
        compiler_params=pltpu.CompilerParams(
            dimension_semantics=sem,
            vmem_limit_bytes=48 * 1024 * 1024,  # headroom on v5e/v6e, < v7x 64 MiB physical
        ),
        cost_estimate=pl.CostEstimate(flops=int(flops), transcendentals=0,
                                      bytes_accessed=int(bytes_accessed)),
    )(*args)

    return out if Mp == M else out[:, :, :M]


# --------------------------------------------------------------------------- #
# Bottleneck module (eval-mode BN, multi-BN selection by bn_name)
# --------------------------------------------------------------------------- #
class BottleneckPallas:
    expansion = 4

    def __init__(self, inplanes, planes, stride=1, groups=1, base_width=64,
                 dilation=1, bn_names=None, key=None, eps=1e-5):
        if groups != 1 or dilation != 1:
            # TODO(synk): grouped / dilated conv3x3 not implemented in the Pallas path.
            raise NotImplementedError("only groups=1, dilation=1 supported")
        if key is None:
            key = jax.random.PRNGKey(0)
        self.inplanes = inplanes
        self.planes = planes
        self.stride = stride
        self.eps = eps
        self.bn_names = bn_names
        self.width = int(planes * (base_width / 64.0)) * groups
        self.out_ch = planes * self.expansion
        self.has_downsample = (stride != 1) or (inplanes != self.out_ch)

        n_bn = 1 if bn_names is None else len(bn_names)
        if bn_names is not None:
            self.bn_names_dict = {n: i for i, n in enumerate(bn_names)}

        keys = jax.random.split(key, 8)

        # conv weights, stored f32 like PyTorch (Cout, Cin [, kh, kw])
        self.w1 = 0.1 * jax.random.normal(keys[0], (self.width, inplanes), jnp.float32)
        self.w2 = 0.1 * jax.random.normal(keys[1], (self.width, self.width, 3, 3), jnp.float32)
        self.w3 = 0.1 * jax.random.normal(keys[2], (self.out_ch, self.width), jnp.float32)
        if self.has_downsample:
            self.w_ds = 0.1 * jax.random.normal(keys[3], (self.out_ch, inplanes), jnp.float32)

        def init_bn(k, c):
            ks = jax.random.split(k, 4 * n_bn)
            params = []
            for i in range(n_bn):
                gamma = 1.0 + 0.1 * jax.random.normal(ks[4 * i + 0], (c,), jnp.float32)
                beta = 0.1 * jax.random.normal(ks[4 * i + 1], (c,), jnp.float32)
                mean = 0.05 * jax.random.normal(ks[4 * i + 2], (c,), jnp.float32)
                var = jnp.abs(1.0 + 0.1 * jax.random.normal(ks[4 * i + 3], (c,), jnp.float32))
                params.append((gamma, beta, mean, var))
            return params

        self.bn1 = init_bn(keys[4], self.width)
        self.bn2 = init_bn(keys[5], self.width)
        self.bn3 = init_bn(keys[6], self.out_ch)
        if self.has_downsample:
            self.bn_ds = init_bn(keys[7], self.out_ch)

    def _bn_index(self, bn_name):
        return 0 if bn_name is None else self.bn_names_dict[bn_name]

    def _folded(self, w2d, bn_params):
        """Fold eval-mode BN into the weights: returns (bf16 w', f32 shift(Co,1))."""
        gamma, beta, mean, var = bn_params
        scale = gamma * lax.rsqrt(var + self.eps)
        shift = beta - mean * scale
        wf = (w2d * scale[:, None]).astype(jnp.bfloat16)
        return wf, shift.reshape(-1, 1).astype(jnp.float32)

    def __call__(self, x):
        out, bn_name = x[0], x[1]
        idx = self._bn_index(bn_name)
        N, Cin, H, W = out.shape
        s = self.stride
        Ho = (H - 1) // s + 1
        Wo = (W - 1) // s + 1

        # ---- conv1 (1x1) + bn1 + relu (bf16 activations / folded bf16 weights)
        w1f, t1 = self._folded(self.w1, self.bn1[idx])
        x1 = out.reshape(N, Cin, H * W).astype(jnp.bfloat16)
        h = _conv_bn_act(x1, w1f, t1, relu=True, out_dtype=jnp.bfloat16)
        h = h.reshape(N, self.width, H, W)

        # ---- conv2 (3x3, stride s, pad 1) + bn2 + relu ----------------------
        # 9-tap im2col in the wrapper (bf16); the contraction stays in the
        # fused Pallas matmul kernel.
        # TODO(synk): replace with an in-kernel halo-DMA 3x3 conv to avoid the
        # 9x activation re-read at large shapes.
        w2f, t2 = self._folded(self.w2.reshape(self.width, self.width * 9), self.bn2[idx])
        hp = jnp.pad(h, ((0, 0), (0, 0), (1, 1), (1, 1)))
        taps = [hp[:, :, dy:dy + (Ho - 1) * s + 1:s, dx:dx + (Wo - 1) * s + 1:s]
                for dy in range(3) for dx in range(3)]
        xcol = jnp.stack(taps, axis=2).reshape(N, self.width * 9, Ho * Wo)
        h2 = _conv_bn_act(xcol, w2f, t2, relu=True, out_dtype=jnp.bfloat16)

        # ---- conv3 (1x1) + bn3 (+ fused downsample OR identity residual) + relu
        w3f, t3 = self._folded(self.w3, self.bn3[idx])
        if self.has_downsample:
            # Fuse the 1x1 stride-s downsample as a second matmul stream:
            # y = (s3.W3)@h2 + (sd.Wds)@xs + (t3 + td)
            wdf, td = self._folded(self.w_ds, self.bn_ds[idx])
            xs = out[:, :, ::s, ::s].reshape(N, Cin, Ho * Wo).astype(jnp.bfloat16)
            y = _conv_bn_act(h2, w3f, t3 + td, relu=True, out_dtype=jnp.float32,
                             x2=xs, w2=wdf)
        else:
            identity = out.reshape(N, Cin, H * W).astype(jnp.bfloat16)
            y = _conv_bn_act(h2, w3f, t3, relu=True, out_dtype=jnp.float32,
                             residual=identity)
        y = y.reshape(N, self.out_ch, Ho, Wo)
        return [y, bn_name]


# --------------------------------------------------------------------------- #
# Pure-JAX reference (eval-mode BN), high precision f32
# --------------------------------------------------------------------------- #
def _reference_forward(m, x, bn_name):
    idx = m._bn_index(bn_name)
    hp = lax.Precision.HIGHEST

    def bn(y, params):
        gamma, beta, mean, var = params
        sc = gamma * lax.rsqrt(var + m.eps)
        return (y - mean[None, :, None, None]) * sc[None, :, None, None] \
            + beta[None, :, None, None]

    out = jnp.einsum('nchw,oc->nohw', x, m.w1, precision=hp)
    out = jax.nn.relu(bn(out, m.bn1[idx]))
    out = lax.conv_general_dilated(out, m.w2, window_strides=(m.stride, m.stride),
                                   padding=((1, 1), (1, 1)),
                                   dimension_numbers=('NCHW', 'OIHW', 'NCHW'),
                                   precision=hp)
    out = jax.nn.relu(bn(out, m.bn2[idx]))
    out = jnp.einsum('nchw,oc->nohw', out, m.w3, precision=hp)
    out = bn(out, m.bn3[idx])
    if m.has_downsample:
        idd = jnp.einsum('nchw,oc->nohw', x[:, :, ::m.stride, ::m.stride],
                         m.w_ds, precision=hp)
        idd = bn(idd, m.bn_ds[idx])
    else:
        idd = x
    return jax.nn.relu(out + idd)


# --------------------------------------------------------------------------- #
if __name__ == "__main__":
    key = jax.random.PRNGKey(0)
    k_in1, k_in2, k_mod1, k_mod2 = jax.random.split(key, 4)
    bn_names = ["normal", "pgd"]

    # Config 1: stride-2 bottleneck with (fused) downsample.
    N, inplanes, H, W = 2, 8, 16, 16
    planes, stride = 4, 2
    x1 = jax.random.normal(k_in1, (N, inplanes, H, W), jnp.float32)
    m1 = BottleneckPallas(inplanes, planes, stride=stride, bn_names=bn_names, key=k_mod1)
    out1, name1 = m1([x1, "pgd"])
    out1 = jax.block_until_ready(out1)
    ref1 = _reference_forward(m1, x1, "pgd")
    assert out1.shape == (N, planes * 4, H // stride, W // stride)
    assert name1 == "pgd"
    assert bool(jnp.all(jnp.isfinite(out1)))
    err1 = float(jnp.max(jnp.abs(out1 - ref1)))
    assert err1 < 5e-2, f"config1 max abs err {err1}"   # bf16 MXU inputs, f32 accumulation

    # Config 2: stride-1 identity bottleneck (no downsample).
    inplanes2, H2 = planes * 4, 8
    x2 = jax.random.normal(k_in2, (N, inplanes2, H2, H2), jnp.float32)
    m2 = BottleneckPallas(inplanes2, planes, stride=1, bn_names=bn_names, key=k_mod2)
    out2, name2 = m2([x2, "normal"])
    out2 = jax.block_until_ready(out2)
    ref2 = _reference_forward(m2, x2, "normal")
    assert out2.shape == x2.shape
    assert name2 == "normal"
    assert bool(jnp.all(jnp.isfinite(out2)))
    err2 = float(jnp.max(jnp.abs(out2 - ref2)))
    assert err2 < 5e-2, f"config2 max abs err {err2}"

    print("KERNEL_OK")
</pallas_src>

<mosaic_0001>
module attributes {stable_mosaic.version = 11 : i64} {
  func.func @_matmul_bn_kernel(%arg0: i32, %arg1: i32, %arg2: i32, %arg3: memref<1x8x256xbf16, #tpu.memory_space<vmem>>, %arg4: memref<4x8xbf16, #tpu.memory_space<vmem>>, %arg5: memref<4x1xf32, #tpu.memory_space<vmem>>, %arg6: memref<1x4x256xbf16, #tpu.memory_space<vmem>>) attributes {dimension_semantics = [#tpu.dimension_semantics<parallel>, #tpu.dimension_semantics<parallel>, #tpu.dimension_semantics<parallel>], iteration_bounds = array<i64: 1, 1, 2>, scalar_prefetch = 0 : i64, scratch_operands = 0 : i64, tpu.core_type = #tpu.core_type<tc>, window_params = [{transform_indices = @transform_0, window_bounds = array<i64: 1, 8, 256>}, {transform_indices = @transform_1, window_bounds = array<i64: 4, 8>}, {transform_indices = @transform_2, window_bounds = array<i64: 4, 1>}, {transform_indices = @transform_3, window_bounds = array<i64: 1, 4, 256>}]} {
    %c0 = arith.constant 0 : index
    %c0_0 = arith.constant 0 : index
    %0 = vector.load %arg4[%c0, %c0_0] : memref<4x8xbf16, #tpu.memory_space<vmem>>, vector<4x8xbf16>
    %c0_1 = arith.constant 0 : index
    %c0_2 = arith.constant 0 : index
    %c0_3 = arith.constant 0 : index
    %1 = vector.load %arg3[%c0_1, %c0_2, %c0_3] : memref<1x8x256xbf16, #tpu.memory_space<vmem>>, vector<1x8x256xbf16>
    %2 = vector.shape_cast %1 : vector<1x8x256xbf16> to vector<8x256xbf16>
    %cst = arith.constant dense<0.000000e+00> : vector<4x256xf32>
    %3 = tpu.matmul %0, %2, %cst {dimension_numbers = #tpu.dot_dimension_numbers<[1], [0], [0], [1], [0, 0, 1, 1], [], []>} : vector<4x8xbf16>, vector<8x256xbf16>, vector<4x256xf32> -> vector<4x256xf32>
    %c0_4 = arith.constant 0 : index
    %c0_5 = arith.constant 0 : index
    %4 = vector.load %arg5[%c0_4, %c0_5] : memref<4x1xf32, #tpu.memory_space<vmem>>, vector<4x1xf32>
    %5 = vector.broadcast %4 : vector<4x1xf32> to vector<4x256xf32>
    %6 = arith.addf %3, %5 : vector<4x256xf32>
    %cst_6 = arith.constant 0.000000e+00 : f32
    %7 = vector.broadcast %cst_6 : f32 to vector<4x256xf32>
    %8 = arith.maximumf %6, %7 : vector<4x256xf32>
    %9 = arith.truncf %8 : vector<4x256xf32> to vector<4x256xbf16>
    %c0_7 = arith.constant 0 : index
    %c0_8 = arith.constant 0 : index
    %c0_9 = arith.constant 0 : index
    %10 = vector.load %arg6[%c0_7, %c0_8, %c0_9] : memref<1x4x256xbf16, #tpu.memory_space<vmem>>, vector<1x4x256xbf16>
    %11 = vector.shape_cast %10 : vector<1x4x256xbf16> to vector<4x256xbf16>
    %12 = vector.shape_cast %9 : vector<4x256xbf16> to vector<1x4x256xbf16>
    tpu.vector_store %arg6[%c0_7, %c0_8, %c0_9], %12 {strides = array<i32>} : memref<1x4x256xbf16, #tpu.memory_space<vmem>>, vector<1x4x256xbf16>,
    return
  }
  func.func @transform_0(%arg0: i32, %arg1: i32, %arg2: i32) -> (i32, i32, i32) {
    %c0_i32 = arith.constant 0 : i32
    %c0_i32_0 = arith.constant 0 : i32
    return %arg2, %c0_i32, %arg1 : i32, i32, i32
  }
  func.func @transform_1(%arg0: i32, %arg1: i32, %arg2: i32) -> (i32, i32) {
    %c0_i32 = arith.constant 0 : i32
    %c0_i32_0 = arith.constant 0 : i32
    return %arg0, %c0_i32 : i32, i32
  }
  func.func @transform_2(%arg0: i32, %arg1: i32, %arg2: i32) -> (i32, i32) {
    %c0_i32 = arith.constant 0 : i32
    %c0_i32_0 = arith.constant 0 : i32
    return %arg0, %c0_i32 : i32, i32
  }
  func.func @transform_3(%arg0: i32, %arg1: i32, %arg2: i32) -> (i32, i32, i32) {
    %c0_i32 = arith.constant 0 : i32
    return %arg2, %arg0, %arg1 : i32, i32, i32
  }
}

</mosaic_0001>

<llo_original>
// kernel: tpu_custom_call.1
$region0: #{tpu_custom_call.1}
  #allocation0 [shape = 'u32[]', space=smem, size = 0x4, offset = 0x4, fixed_abs, tag = 'smem constant byte address 0x4 - core index']
  #allocation1 [shape = 'u32[144,128]{1,0:T(1,128)}', space=vmem, size = 0x12000, scoped, tag = 'internal scratch']
  %s0 = inlined_call_operand.hbm [shape: bf16[2,8,256], index: 0, kind: input, shape index: {}]
  %s1 = inlined_call_operand.vmem [shape: bf16[4,8], index: 1, kind: input, shape index: {}]
  %s2 = inlined_call_operand.vmem [shape: f32[4,1], index: 2, kind: input, shape index: {}]
  %s3 = inlined_call_operand.hbm [shape: bf16[2,4,256], index: 3, kind: output, shape index: {}]
  %s4 = sld [smem:[#allocation0]]
  $region49: #{tpu_custom_call.1} parent=0
    _
  %s6 = ssub.s32 1, %s4
  %s7 = scalar_select 0, %s6, %s4
  $region1: #{tpu_custom_call.1} parent=0
    #allocation2 [shape = 'u8[8192]{0}', space=vmem, size = 0x2000, scoped, tag = 'input window, operand 0']
    #allocation3 [shape = 's32[2]{0}', space=sflag, size = 0x8, scoped, tag = 'scoped memory for tpu_custom_call.1']
    #allocation4 [shape = 's32[2]{0}', space=sflag, size = 0x8, scoped, tag = 'scoped memory for tpu_custom_call.1']
    #allocation5 [shape = 'u8[4096]{0}', space=vmem, size = 0x1000, scoped, tag = 'output window, operand 0']
    %8 = vsyncpa [#allocation3], 0
    %s9 = scalar_lea.sflag [#allocation3], 1
    %10 = vsyncpa %s9, 0
    %11 = vsyncpa [#allocation4], 0
    %s12 = scalar_lea.sflag [#allocation4], 1
    %13 = vsyncpa %s12, 0
    loop: start=0, step=1, limit=4
    $region2: #{tpu_custom_call.1} parent=1 // loop_pre_header
      _
    $region3: #{tpu_custom_call.1} parent=1 // loop_header
      %s15 = sphi 0, %s19
      %p16 = scmp.ge.s32.totalorder %s15, 4
      %s22 = sphi 0, %s41
      %s23 = sphi 0, %s37
      %s24 = sphi 0, %s33
      %s25 = sphi 0, %s22
      %s26 = sphi 0, %s23
      %s27 = sphi 0, %s24
      %s28 = sphi 0, %s25
      %s29 = sphi 0, %s26
      %s30 = sphi 0, %s27
      %s46 = sphi 0, %s48
      %s49 = sphi 0, %s46
      %s50 = sphi 0, %s49
      %s66 = sphi 0, %s50
      %s72 = sphi 0, %s74
      %s75 = sphi 0, %s72
      %s76 = sphi 0, %s75
      %s92 = sphi 0, %s76
      %s98 = sphi 0, %s100
      %s101 = sphi 0, %s98
      %s102 = sphi 0, %s101
      %s118 = sphi 0, %s102
      %s128 = sphi 0, %s130
      %s131 = sphi 0, %s128
      %s132 = sphi 0, %s131
      %s148 = sphi 0, %s132
    $region4: #{tpu_custom_call.1} parent=1 // loop_header_branch
      %18 = sbr.rel (%p16) target = $region8
    $region5: #{tpu_custom_call.1} parent=1 // loop_body
      %s20 = ssub.s32 %s15, 1
      %s21 = ssub.s32 %s15, 2
      %s31 = sadd.s32 1, %s24
      %p32 = scmp.ge.s32.totalorder %s31, 2
      %s33 = scalar_select %p32, 0, %s31
      %s34 = sadd.s32 1, %s23
      %s35 = scalar_select %p32, %s34, %s23
      %p36 = scmp.ge.s32.totalorder %s35, 1
      %s37 = scalar_select %p36, 0, %s35
      %s38 = sadd.s32 1, %s22
      %s39 = scalar_select %p36, %s38, %s22
      %p40 = scmp.ge.s32.totalorder %s39, 1
      %s41 = scalar_select %p40, 0, %s39
      %s42 = ssub.s32 %s24, %s33
      %s43 = ssub.s32 %s23, %s37
      %s44 = sor.u32 %s42, %s43
      %p45 = scmp.eq.s32.totalorder %s44, 0
      %s47 = sadd.s32 %s46, 1
      %s48 = scalar_select %p45, %s46, %s47
      %p51 = pneg %p45
      %p52 = scmp.eq.s32.totalorder %s15, 1
      %p53 = por %p51, %p52
      %p54 = scmp.ne.s32.totalorder %s46, %s49
      %p55 = scmp.eq.s32.totalorder %s15, 0
      %p56 = por %p54, %p55
      %p57 = scmp.ne.s32.totalorder %s46, %s49
      %p58 = scmp.eq.s32.totalorder %s20, 1
      %p59 = por %p57, %p58
      %p60 = scmp.ne.s32.totalorder %s49, %s50
      %p61 = scmp.eq.s32.totalorder %s20, 0
      %p62 = por %p60, %p61
      %p63 = scmp.ne.s32.totalorder %s49, %s50
      %p64 = scmp.eq.s32.totalorder %s21, 1
      %p65 = por %p63, %p64
      %p67 = scmp.ne.s32.totalorder %s50, %s66
      %p68 = scmp.eq.s32.totalorder %s21, 0
      %p69 = por %p67, %p68
      %s70 = ssub.s32 %s22, %s41
      %p71 = scmp.eq.s32.totalorder %s70, 0
      %s73 = sadd.s32 %s72, 1
      %s74 = scalar_select %p71, %s72, %s73
      %p77 = pneg %p71
      %p78 = scmp.eq.s32.totalorder %s15, 1
      %p79 = por %p77, %p78
      %p80 = scmp.ne.s32.totalorder %s72, %s75
      %p81 = scmp.eq.s32.totalorder %s15, 0
      %p82 = por %p80, %p81
      %p83 = scmp.ne.s32.totalorder %s72, %s75
      %p84 = scmp.eq.s32.totalorder %s20, 1
      %p85 = por %p83, %p84
      %p86 = scmp.ne.s32.totalorder %s75, %s76
      %p87 = scmp.eq.s32.totalorder %s20, 0
      %p88 = por %p86, %p87
      %p89 = scmp.ne.s32.totalorder %s75, %s76
      %p90 = scmp.eq.s32.totalorder %s21, 1
      %p91 = por %p89, %p90
      %p93 = scmp.ne.s32.totalorder %s76, %s92
      %p94 = scmp.eq.s32.totalorder %s21, 0
      %p95 = por %p93, %p94
      %s96 = ssub.s32 %s22, %s41
      %p97 = scmp.eq.s32.totalorder %s96, 0
      %s99 = sadd.s32 %s98, 1
      %s100 = scalar_select %p97, %s98, %s99
      %p103 = pneg %p97
      %p104 = scmp.eq.s32.totalorder %s15, 1
      %p105 = por %p103, %p104
      %p106 = scmp.ne.s32.totalorder %s98, %s101
      %p107 = scmp.eq.s32.totalorder %s15, 0
      %p108 = por %p106, %p107
      %p109 = scmp.ne.s32.totalorder %s98, %s101
      %p110 = scmp.eq.s32.totalorder %s20, 1
      %p111 = por %p109, %p110
      %p112 = scmp.ne.s32.totalorder %s101, %s102
      %p113 = scmp.eq.s32.totalorder %s20, 0
      %p114 = por %p112, %p113
      %p115 = scmp.ne.s32.totalorder %s101, %s102
      %p116 = scmp.eq.s32.totalorder %s21, 1
      %p117 = por %p115, %p116
      %p119 = scmp.ne.s32.totalorder %s102, %s118
      %p120 = scmp.eq.s32.totalorder %s21, 0
      %p121 = por %p119, %p120
      %s122 = ssub.s32 %s24, %s33
      %s123 = ssub.s32 %s22, %s41
      %s124 = sor.u32 %s122, %s123
      %s125 = ssub.s32 %s23, %s37
      %s126 = sor.u32 %s124, %s125
      %p127 = scmp.eq.s32.totalorder %s126, 0
      %s129 = sadd.s32 %s128, 1
      %s130 = scalar_select %p127, %s128, %s129
      %p133 = pneg %p127
      %p134 = scmp.eq.s32.totalorder %s15, 1
      %p135 = por %p133, %p134
      %p136 = scmp.ne.s32.totalorder %s128, %s131
      %p137 = scmp.eq.s32.totalorder %s15, 0
      %p138 = por %p136, %p137
      %p139 = scmp.ne.s32.totalorder %s128, %s131
      %p140 = scmp.eq.s32.totalorder %s20, 1
      %p141 = por %p139, %p140
      %p142 = scmp.ne.s32.totalorder %s131, %s132
      %p143 = scmp.eq.s32.totalorder %s20, 0
      %p144 = por %p142, %p143
      %p145 = scmp.ne.s32.totalorder %s131, %s132
      %p146 = scmp.eq.s32.totalorder %s21, 1
      %p147 = por %p145, %p146
      %p149 = scmp.ne.s32.totalorder %s132, %s148
      %p150 = scmp.eq.s32.totalorder %s21, 0
      %p151 = por %p149, %p150
      %p152 = scmp.le.s32.totalorder 1, %s15
      %p153 = scmp.lt.s32.totalorder %s15, 3
      %p154 = pnand %p152, %p153
      %p155 = pneg %p154
      // Predicated region
      $region9: #{tpu_custom_call.1} parent=5 // pred_check
        _
      $region10: #{tpu_custom_call.1} parent=5 // pred_check_branch
        %157 = sbr.rel (%p154) target = $region12
      $region11: #{tpu_custom_call.1} parent=5 // pred_region
        %s158 = ssub.s32 %s15, 1
        // Predicated region
        $region13: #{tpu_custom_call.1} parent=11 // pred_check
          %p159 = pneg %p88
        $region14: #{tpu_custom_call.1} parent=11 // pred_check_branch
          %161 = sbr.rel (%p159) target = $region16
        $region15: #{tpu_custom_call.1} parent=11 // pred_region
          %p162 = scmp.lt.s32.totalorder %s25, 0
          %s163 = scalar_select %p162, %s25, 0
          %s164 = smul.addr %s163, 2
          %s165 = scalar_lea.vmem %s1, %s164
        $region16: #{tpu_custom_call.1} parent=11 // pred_fallthru
          _
        // Predicated region
        $region17: #{tpu_custom_call.1} parent=11 // pred_check
          %p166 = pneg %p114
        $region18: #{tpu_custom_call.1} parent=11 // pred_check_branch
          %168 = sbr.rel (%p166) target = $region20
        $region19: #{tpu_custom_call.1} parent=11 // pred_region
          %p169 = scmp.lt.s32.totalorder %s25, 0
          %s170 = scalar_select %p169, %s25, 0
          %s171 = smul.addr %s170, 4
          %s172 = scalar_lea.vmem %s2, %s171
        $region20: #{tpu_custom_call.1} parent=11 // pred_fallthru
          _
      $region12: #{tpu_custom_call.1} parent=5 // pred_fallthru
        _
      %p173 = scmp.lt.s32.totalorder %s15, 2
      // Predicated region
      $region21: #{tpu_custom_call.1} parent=5 // pred_check
        %p174 = pneg %p173
      $region22: #{tpu_custom_call.1} parent=5 // pred_check_branch
        %176 = sbr.rel (%p174) target = $region24
      $region23: #{tpu_custom_call.1} parent=5 // pred_region
        // Predicated region
        $region25: #{tpu_custom_call.1} parent=23 // pred_check
          %p177 = pneg %p56
        $region26: #{tpu_custom_call.1} parent=23 // pred_check_branch
          %179 = sbr.rel (%p177) target = $region28
        $region27: #{tpu_custom_call.1} parent=23 // pred_region
          %s180 = sand.u32 %s46, 1
          %s181 = scalar_lea.sflag [#allocation3], %s180
          %s182 = sand.u32 %s46, 1
          %s183 = smul.addr %s182, 8
          %s184 = scalar_lea.vmem [#allocation2], %s183
          %s185 = smul.u32 2, %s23
          %s187 = ssub.s32 128, 128
          %188 = vsyncadd %s181, %s187
          %s189 = smul.addr %s24, 2
          %s190 = sadd.s32 %s185, %s189
          %s191 = smul.addr %s190, 64
          %s192 = scalar_lea.hbm %s0, %s191
          %s194 = sshll.u32 %s184, 4
          %s195 = int_to_ptr.vmem [resolvable:$true] %s194
          %197 = dma.hbm_to_vmem [thread:$0]  %s192, 128, %s195, %s181
        $region28: #{tpu_custom_call.1} parent=23 // pred_fallthru
          _
      $region24: #{tpu_custom_call.1} parent=5 // pred_fallthru
        _
      %p198 = scmp.le.s32.totalorder 1, %s15
      %p199 = scmp.lt.s32.totalorder %s15, 3
      %p200 = pnand %p198, %p199
      %p201 = pneg %p200
      // Predicated region
      $region29: #{tpu_custom_call.1} parent=5 // pred_check
        _
      $region30: #{tpu_custom_call.1} parent=5 // pred_check_branch
        %203 = sbr.rel (%p200) target = $region32
      $region31: #{tpu_custom_call.1} parent=5 // pred_region
        %s204 = ssub.s32 %s15, 1
        %s205 = sand.u32 %s49, 1
        %s206 = scalar_lea.sflag [#allocation3], %s205
        %s207 = sand.u32 %s49, 1
        %s208 = smul.addr %s207, 8
        %s209 = scalar_lea.vmem [#allocation2], %s208
        // Predicated region
        $region33: #{tpu_custom_call.1} parent=31 // pred_check
          %p210 = pneg %p62
        $region34: #{tpu_custom_call.1} parent=31 // pred_check_branch
          %212 = sbr.rel (%p210) target = $region36
        $region35: #{tpu_custom_call.1} parent=31 // pred_region
          %213 = dma.done %s206, 128
        $region36: #{tpu_custom_call.1} parent=31 // pred_fallthru
          _
        %s214 = sand.u32 %s49, 1
        %s215 = scalar_lea.sflag [#allocation3], %s214
        %s216 = sand.u32 %s49, 1
        %s217 = smul.addr %s216, 8
        %s218 = scalar_lea.vmem [#allocation2], %s217
        %p219 = pneg %p62
        %p220 = pneg %p59
        %p221 = scmp.lt.s32.totalorder %s25, 0
        %s222 = scalar_select %p221, %s25, 0
        %s223 = smul.addr %s222, 2
        %s224 = scalar_lea.vmem %s1, %s223
        %p225 = pneg %p88
        %p226 = pneg %p85
        %p227 = scmp.lt.s32.totalorder %s25, 0
        %s228 = scalar_select %p227, %s25, 0
        %s229 = smul.addr %s228, 4
        %s230 = scalar_lea.vmem %s2, %s229
        %p231 = pneg %p114
        %p232 = pneg %p111
        %p233 = pneg %p144
        %p234 = pneg %p141
        %s235 = sand.u32 %s131, 1
        %s236 = scalar_lea.sflag [#allocation4], %s235
        %s237 = sand.u32 %s131, 1
        %s238 = smul.addr %s237, 4
        %s239 = scalar_lea.vmem [#allocation5], %s238
        %s240 = smul.u32 2, %s26
        %p241 = scmp.lt.s32.totalorder %s25, 0
        %s242 = scalar_select %p241, %s25, 0
        %s243 = smul.addr %s242, 2
        %s244 = scalar_lea.vmem %s1, %s243
        %p245 = scmp.lt.s32.totalorder %s25, 0
        %s246 = scalar_select %p245, %s25, 0
        %s247 = smul.addr %s246, 4
        %s248 = scalar_lea.vmem %s2, %s247
        %s249 = smul.u32 2, %s26
        %v251 = vld [vmem:[%s244] sm:$0x3]
        %v252 = vld [vmem:[%s209] sm:$0xff]
        %v253 = vld [vmem:[%s248] sm:$0xf]
        %255 = vset.pattern.permute.xlu0 0
        %256 = vperm.xlu0 %255, %v253
        %v257 = vpop.permute.xlu0 %256
        %v260 = vunpack.c.l.b16 %v252
        %v261 = vunpack.c.h.b16 %v252
        %v262 = vpack.c.b16 %v260, %v260
        %v263 = vpack.c.b16 %v261, %v261
        %vm264 = vcmask 64512
        %v266 = vsel %vm264, %v251, 0
        %vm268 = vcmask 1043456
        %v270 = vsel %vm268, %v262, 0
        %v273 = vsel %vm268, %v263, 0
        %275 = vmatprep.subr.bf16.mxu0 %v273
        %276 = vmatpush1.bf16.msra.mxu0 %v270
        %277 = vmatprep.subr.bf16.mxu0 0
        %278 = vmatpush1.bf16.msra.mxu0 0
        %279 = vmatprep.subr.bf16.mxu0 0
        %280 = vmatpush1.bf16.msra.mxu0 0
        %281 = vmatprep.subr.bf16.mxu0 0
        %282 = vmatpush1.bf16.msra.mxu0 0
        %283 = vmatprep.subr.bf16.mxu0 0
        %284 = vmatpush1.bf16.msra.mxu0 0
        %285 = vmatprep.subr.bf16.mxu0 0
        %286 = vmatpush1.bf16.msra.mxu0 0
        %287 = vmatprep.subr.bf16.mxu0 0
        %288 = vmatpush1.bf16.msra.mxu0 0
        %289 = vmatprep.subr.bf16.mxu0 0
        %290 = vmatpush1.bf16.msra.mxu0 0
        %291 = vmatprep.subr.bf16.mxu0 0
        %292 = vmatpush1.bf16.msra.mxu0 0
        %293 = vmatprep.subr.bf16.mxu0 0
        %294 = vmatpush1.bf16.msra.mxu0 0
        %295 = vmatprep.subr.bf16.mxu0 0
        %296 = vmatpush1.bf16.msra.mxu0 0
        %297 = vmatprep.subr.bf16.mxu0 0
        %298 = vmatpush1.bf16.msra.mxu0 0
        %299 = vmatprep.subr.bf16.mxu0 0
        %300 = vmatpush1.bf16.msra.mxu0 0
        %301 = vmatprep.subr.bf16.mxu0 0
        %302 = vmatpush1.bf16.msra.mxu0 0
        %303 = vmatprep.subr.bf16.mxu0 0
        %304 = vmatpush1.bf16.msra.mxu0 0
        %305 = vmatprep.subr.bf16.mxu0 0
        %306 = vmatpush1.bf16.msra.mxu0 0
        %307 = vmatprep.mubr.bf16.mxu0 0
        %308 = vmatmul.mubr.bf16.gmra.mrb[0].mxu0 %v266
        %v309 = vpop.f32.mrb[0].mxu0
        %v310 = vadd.f32 %v257, %v309
        %v311 = vpop.f32.mrb[0].mxu0
        %v312 = vadd.f32 %v257, %v311
        %v313 = vpop.f32.mrb[0].mxu0
        %v314 = vpop.f32.mrb[0].mxu0
        %315 = vdwg.mxu0
        %v316 = vmax.f32 %v310, 0.0
        %v317 = vmax.f32 %v312, 0.0
        %v318 = vpack.c.bf16 %v316, %v316
        %v319 = vpack.c.bf16 %v317, %v317
        %v322 = vcombine.low %v318, %v319
        %v324 = vunpack.c.l.s4 1983009808
        %v325 = vunpack.c.0.s8 %v324
        %v326 = vlaneseq
        %v327 = vshrl.u32 %v326, 7
        %v328 = vsub.s32 %v325, %v327
        %v329 = vrot.slane %v322, %v328
        %331 = vst [vmem:[%s239] sm:$0xf] %v329
        %s332 = sand.u32 %s131, 1
        %s333 = scalar_lea.sflag [#allocation4], %s332
        %s334 = sand.u32 %s131, 1
        %s335 = smul.addr %s334, 4
        %s336 = scalar_lea.vmem [#allocation5], %s335
        // Predicated region
        $region37: #{tpu_custom_call.1} parent=31 // pred_check
          %p337 = pneg %p141
        $region38: #{tpu_custom_call.1} parent=31 // pred_check_branch
          %339 = sbr.rel (%p337) target = $region40
        $region39: #{tpu_custom_call.1} parent=31 // pred_region
          %s340 = smul.u32 2, %s26
          %s342 = ssub.s32 64, 64
          %343 = vsyncadd %s333, %s342
          %s344 = smul.addr %s25, 2
          %s345 = sadd.s32 %s340, %s344
          %s346 = smul.addr %s27, 2
          %s347 = sadd.s32 %s345, %s346
          %s348 = smul.addr %s347, 32
          %s349 = scalar_lea.hbm %s3, %s348
          %s351 = sshll.u32 %s336, 4
          %s352 = int_to_ptr.vmem [resolvable:$true] %s351
          %354 = dma.vmem_to_hbm [thread:$0]  %s352, 64, %s349, %s333
        $region40: #{tpu_custom_call.1} parent=31 // pred_fallthru
          _
      $region32: #{tpu_custom_call.1} parent=5 // pred_fallthru
        _
      %p355 = scmp.le.s32.totalorder 2, %s15
      // Predicated region
      $region41: #{tpu_custom_call.1} parent=5 // pred_check
        %p356 = pneg %p355
      $region42: #{tpu_custom_call.1} parent=5 // pred_check_branch
        %358 = sbr.rel (%p356) target = $region44
      $region43: #{tpu_custom_call.1} parent=5 // pred_region
        %s359 = ssub.s32 %s15, 2
        // Predicated region
        $region45: #{tpu_custom_call.1} parent=43 // pred_check
          %p360 = pneg %p147
        $region46: #{tpu_custom_call.1} parent=43 // pred_check_branch
          %362 = sbr.rel (%p360) target = $region48
        $region47: #{tpu_custom_call.1} parent=43 // pred_region
          %s363 = sand.u32 %s132, 1
          %s364 = scalar_lea.sflag [#allocation4], %s363
          %s365 = sand.u32 %s132, 1
          %s366 = smul.addr %s365, 4
          %s367 = scalar_lea.vmem [#allocation5], %s366
          %368 = dma.done %s364, 64
        $region48: #{tpu_custom_call.1} parent=43 // pred_fallthru
          _
      $region44: #{tpu_custom_call.1} parent=5 // pred_fallthru
        _
    $region6: #{tpu_custom_call.1} parent=1 // loop_footer
      %s19 = sadd.s32 1, %s15
    $region7: #{tpu_custom_call.1} parent=1 // loop_footer_branch
      %14 = sbr.rel target = $region3
    $region8: #{tpu_custom_call.1} parent=1 // loop_exit
      _
    %369 = vsyncpa [#allocation3], 1
    %s370 = scalar_lea.sflag [#allocation3], 1
    %371 = vsyncpa %s370, 1
    %372 = vsyncpa [#allocation4], 1
    %s373 = scalar_lea.sflag [#allocation4], 1
    %374 = vsyncpa %s373, 1

</llo_original>
